<compile_context>
chip_gen: v5e
topology: v5e:2x2
jax: 0.10.0
libtpu: 0.0.40
codegen_flags: <defaults>
</compile_context>

<pallas_src>
import jax
import jax.numpy as jnp
from jax import lax
from jax.experimental import pallas as pl
from jax.experimental.pallas import tpu as pltpu


def _fused_conv_block_kernel(x_ref, b1_ref, b2_ref, o_ref, xpad, midpad):
    # x_ref  : (NB, H, W*Cin)        bf16 lane-dense input slabs (NB batch elements)
    # b1_ref : (3*W*Cin,  W*Cout)    bf16 banded conv1 weights (kh taps concatenated in K)
    # b2_ref : (3*W*Cout, W*Cout)    bf16 banded conv2 weights
    # o_ref  : (NB, H, W*Cout)       f32 lane-dense output (W*Cout == 128)
    # xpad   : VMEM (NB, H+2, W*Cin)  f32  H-padded input scratch
    # midpad : VMEM (NB, H+2, W*Cout) f32  H-padded intermediate scratch (stays in VMEM)
    NB, H, WCin = x_ref.shape
    WCout = o_ref.shape[2]
    mxu_dtype = b1_ref.dtype
    neg = jnp.float32(0.01)  # PyTorch LeakyReLU default slope

    # ---- H 'same' padding into VMEM scratch (paid once per conv, not per tap) ----------
    xpad[:, 0:1, :] = jnp.zeros((NB, 1, WCin), xpad.dtype)
    xpad[:, H + 1:H + 2, :] = jnp.zeros((NB, 1, WCin), xpad.dtype)
    xpad[:, 1:H + 1, :] = x_ref[...].astype(xpad.dtype)

    # ---- conv1 (+ LeakyReLU): single MXU matmul, M = NB*H, K = 3*W*Cin -----------------
    lhs1 = jnp.concatenate(
        [xpad[:, 0:H, :], xpad[:, 1:H + 1, :], xpad[:, 2:H + 2, :]], axis=2
    ).reshape(NB * H, 3 * WCin).astype(mxu_dtype)
    acc = jnp.dot(lhs1, b1_ref[...], preferred_element_type=jnp.float32)
    acc = jnp.where(acc > 0, acc, neg * acc)

    # ---- conv2 (+ LeakyReLU): intermediate never leaves VMEM ---------------------------
    midpad[:, 0:1, :] = jnp.zeros((NB, 1, WCout), midpad.dtype)
    midpad[:, H + 1:H + 2, :] = jnp.zeros((NB, 1, WCout), midpad.dtype)
    midpad[:, 1:H + 1, :] = acc.reshape(NB, H, WCout)

    lhs2 = jnp.concatenate(
        [midpad[:, 0:H, :], midpad[:, 1:H + 1, :], midpad[:, 2:H + 2, :]], axis=2
    ).reshape(NB * H, 3 * WCout).astype(mxu_dtype)
    acc2 = jnp.dot(lhs2, b2_ref[...], preferred_element_type=jnp.float32)
    acc2 = jnp.where(acc2 > 0, acc2, neg * acc2)

    o_ref[...] = acc2.reshape(NB, H, WCout).astype(o_ref.dtype)  # dense 128-lane store


def _banded_weights(w_hwio, W):
    """(3, 3, Cin, Cout) HWIO weights -> (3, W*Cin, W*Cout) block-banded matrices.

    B[kh, i*Cin+ci, j*Cout+co] = w[kh, i-j+1, ci, co] when 0 <= i-j+1 < 3, else 0.
    The band implicitly implements zero 'same' padding along W.
    """
    KH, KW, Cin, Cout = w_hwio.shape
    i = jnp.arange(W)[:, None]          # input spatial position  (block row)
    j = jnp.arange(W)[None, :]          # output spatial position (block col)
    d = i - j + 1                       # kw tap index
    valid = (d >= 0) & (d < KW)
    kw_idx = jnp.clip(d, 0, KW - 1)                          # (W, W)
    blocks = w_hwio[:, kw_idx]                               # (3, W, W, Cin, Cout)
    blocks = jnp.where(valid[None, :, :, None, None], blocks, 0.0)
    # (kh, i, j, ci, co) -> (kh, i, ci, j, co) -> (3, W*Cin, W*Cout)
    return blocks.transpose(0, 1, 3, 2, 4).reshape(KH, W * Cin, W * Cout)


def prepare_conv_block_weights(w1_oihw, w2_oihw, spatial_w, mxu_dtype=jnp.bfloat16):
    """One-time weight preparation (hoisted out of the per-forward path).

    Returns K-concatenated banded weight slabs:
      b1: (3*W*Cin,  W*Cout),  b2: (3*W*Cout, W*Cout), both in `mxu_dtype`.
    The kh ordering matches the kernel's im2col row order (h-1, h, h+1).
    """
    w1 = jnp.transpose(w1_oihw, (2, 3, 1, 0)).astype(jnp.float32)   # OIHW -> HWIO
    w2 = jnp.transpose(w2_oihw, (2, 3, 1, 0)).astype(jnp.float32)
    Cin, Cout = w1.shape[2], w1.shape[3]
    b1 = _banded_weights(w1, spatial_w).reshape(3 * spatial_w * Cin, spatial_w * Cout)
    b2 = _banded_weights(w2, spatial_w).reshape(3 * spatial_w * Cout, spatial_w * Cout)
    return b1.astype(mxu_dtype), b2.astype(mxu_dtype)


def _pick_batch_block(N, H, target_m=256, max_m=1024):
    """Largest divisor of N keeping M = NB*H <= max_m (stop early once >= target_m)."""
    best = 1
    for nb in range(1, N + 1):
        if N % nb:
            continue
        if nb * H <= max_m:
            best = nb
        if nb * H >= target_m:
            break
    return best


def conv_block_forward(x_nchw, b1, b2, *, batch_block=None):
    """conv_block forward. x follows PyTorch NCHW; b1/b2 from prepare_conv_block_weights."""
    N, Cin, H, W = x_nchw.shape
    Cout = b1.shape[1] // W
    mxu_dtype = b1.dtype

    NB = _pick_batch_block(N, H) if batch_block is None else batch_block
    assert N % NB == 0, (N, NB)

    # Layout glue at the PyTorch NCHW boundary: NCHW -> (N, H, W*Cin) lane-dense slabs,
    # cast MXU operand dtype.  (See TODO(synk) above about keeping NHWC end-to-end.)
    x = jnp.transpose(x_nchw, (0, 2, 3, 1)).reshape(N, H, W * Cin).astype(mxu_dtype)

    # Advisory cost estimate + explicit VMEM budget (blocks are double-buffered).
    out_itemsize = jnp.dtype(x_nchw.dtype).itemsize
    in_itemsize = jnp.dtype(mxu_dtype).itemsize
    flops = 2 * N * H * (3 * W * Cin + 3 * W * Cout) * (W * Cout)
    bytes_accessed = (N * H * W * Cin * in_itemsize
                      + (b1.size + b2.size) * in_itemsize
                      + N * H * W * Cout * out_itemsize)
    est_vmem = (2 * NB * H * W * Cin * in_itemsize            # input blocks (x2 buffers)
                + 2 * NB * H * W * Cout * out_itemsize        # output blocks
                + 2 * (b1.size + b2.size) * in_itemsize       # weight blocks
                + 4 * NB * (H + 2) * W * (Cin + Cout)         # f32 padded scratches
                + 2 * 4 * NB * H * 3 * W * (Cin + Cout))      # im2col temporaries
    vmem_limit = int(min(100 * 2**20, max(32 * 2**20, 4 * est_vmem)))

    out = pl.pallas_call(
        _fused_conv_block_kernel,
        out_shape=jax.ShapeDtypeStruct((N, H, W * Cout), x_nchw.dtype),
        grid=(N // NB,),
        in_specs=[
            pl.BlockSpec((NB, H, W * Cin), lambda n: (n, 0, 0)),
            pl.BlockSpec((3 * W * Cin, W * Cout), lambda n: (0, 0)),
            pl.BlockSpec((3 * W * Cout, W * Cout), lambda n: (0, 0)),
        ],
        out_specs=pl.BlockSpec((NB, H, W * Cout), lambda n: (n, 0, 0)),
        scratch_shapes=[
            pltpu.VMEM((NB, H + 2, W * Cin), jnp.float32),    # H-padded input
            pltpu.VMEM((NB, H + 2, W * Cout), jnp.float32),   # H-padded intermediate
        ],
        compiler_params=pltpu.CompilerParams(
            dimension_semantics=("parallel",),
            vmem_limit_bytes=vmem_limit),
        cost_estimate=pl.CostEstimate(flops=flops, transcendentals=0,
                                      bytes_accessed=bytes_accessed),
    )(x, b1, b2)

    # (N, H, W*Cout) -> NCHW at the block boundary.
    return jnp.transpose(out.reshape(N, H, W, Cout), (0, 3, 1, 2))


def _reference_forward(x_nchw, w1_oihw, w2_oihw):
    """Plain-JAX f32 reference (correctness check only)."""
    def conv(x, w):
        return lax.conv_general_dilated(
            x, w, window_strides=(1, 1), padding=((1, 1), (1, 1)),
            dimension_numbers=("NCHW", "OIHW", "NCHW"))
    y = conv(x_nchw, w1_oihw)
    y = jnp.where(y > 0, y, 0.01 * y)
    y = conv(y, w2_oihw)
    y = jnp.where(y > 0, y, 0.01 * y)
    return y


if __name__ == "__main__":
    # Small shapes consistent with the module: batch=2, in_ch=4, out_ch=8, spatial=16.
    N, Cin, Cout, H, W = 2, 4, 8, 16, 16

    key = jax.random.PRNGKey(0)
    kx, k1, k2 = jax.random.split(key, 3)
    x = jax.random.normal(kx, (N, Cin, H, W), dtype=jnp.float32)
    # PyTorch Conv2d weight shape is (O, I, 3, 3), bias=False in the module spec.
    w1 = jax.random.normal(k1, (Cout, Cin, 3, 3), dtype=jnp.float32) * (1.0 / (Cin * 9)) ** 0.5
    w2 = jax.random.normal(k2, (Cout, Cout, 3, 3), dtype=jnp.float32) * (1.0 / (Cout * 9)) ** 0.5

    # Weight prep hoisted: done once per weight update, not per forward call.
    b1, b2 = prepare_conv_block_weights(w1, w2, W, mxu_dtype=jnp.bfloat16)

    fwd = jax.jit(conv_block_forward)
    out = jax.block_until_ready(fwd(x, b1, b2))

    ref = _reference_forward(x, w1, w2)
    assert out.shape == (N, Cout, H, W), out.shape
    max_err = float(jnp.max(jnp.abs(out - ref)))
    mean_err = float(jnp.mean(jnp.abs(out - ref)))
    # bf16 MXU operands with f32 accumulation: small, well-bounded rounding error.
    assert max_err < 1e-1 and mean_err < 1e-2, (max_err, mean_err)

    print("KERNEL_OK")
</pallas_src>

<mosaic_0001>
module attributes {stable_mosaic.version = 11 : i64} {
  func.func @_fused_conv_block_kernel(%arg0: i32, %arg1: memref<2x16x64xbf16, #tpu.memory_space<vmem>>, %arg2: memref<192x128xbf16, #tpu.memory_space<vmem>>, %arg3: memref<384x128xbf16, #tpu.memory_space<vmem>>, %arg4: memref<2x16x128xf32, #tpu.memory_space<vmem>>, %arg5: memref<2x18x64xf32, #tpu.memory_space<vmem>>, %arg6: memref<2x18x128xf32, #tpu.memory_space<vmem>>) attributes {dimension_semantics = [#tpu.dimension_semantics<parallel>], iteration_bounds = array<i64: 1>, scalar_prefetch = 0 : i64, scratch_operands = 2 : i64, tpu.core_type = #tpu.core_type<tc>, window_params = [{transform_indices = @transform_0, window_bounds = array<i64: 2, 16, 64>}, {pipeline_mode = #tpu.pipeline_mode<synchronous>, transform_indices = @transform_1, window_bounds = array<i64: 192, 128>}, {pipeline_mode = #tpu.pipeline_mode<synchronous>, transform_indices = @transform_2, window_bounds = array<i64: 384, 128>}, {transform_indices = @transform_3, window_bounds = array<i64: 2, 16, 128>}]} {
    %cst = arith.constant 0.000000e+00 : f32
    %0 = vector.broadcast %cst : f32 to vector<2x1x64xf32>
    %c0 = arith.constant 0 : index
    %c0_0 = arith.constant 0 : index
    %c0_1 = arith.constant 0 : index
    %1 = vector.load %arg5[%c0, %c0_0, %c0_1] : memref<2x18x64xf32, #tpu.memory_space<vmem>>, vector<2x1x64xf32>
    tpu.vector_store %arg5[%c0, %c0_0, %c0_1], %0 {strides = array<i32>} : memref<2x18x64xf32, #tpu.memory_space<vmem>>, vector<2x1x64xf32>,
    %cst_2 = arith.constant 0.000000e+00 : f32
    %2 = vector.broadcast %cst_2 : f32 to vector<2x1x64xf32>
    %c0_3 = arith.constant 0 : index
    %c17 = arith.constant 17 : index
    %c0_4 = arith.constant 0 : index
    %3 = vector.load %arg5[%c0_3, %c17, %c0_4] : memref<2x18x64xf32, #tpu.memory_space<vmem>>, vector<2x1x64xf32>
    tpu.vector_store %arg5[%c0_3, %c17, %c0_4], %2 {strides = array<i32>} : memref<2x18x64xf32, #tpu.memory_space<vmem>>, vector<2x1x64xf32>,
    %c0_5 = arith.constant 0 : index
    %c0_6 = arith.constant 0 : index
    %c0_7 = arith.constant 0 : index
    %4 = vector.load %arg1[%c0_5, %c0_6, %c0_7] : memref<2x16x64xbf16, #tpu.memory_space<vmem>>, vector<2x16x64xbf16>
    %5 = arith.extf %4 : vector<2x16x64xbf16> to vector<2x16x64xf32>
    %c0_8 = arith.constant 0 : index
    %c1 = arith.constant 1 : index
    %c0_9 = arith.constant 0 : index
    %6 = vector.load %arg5[%c0_8, %c1, %c0_9] : memref<2x18x64xf32, #tpu.memory_space<vmem>>, vector<2x16x64xf32>
    tpu.vector_store %arg5[%c0_8, %c1, %c0_9], %5 {strides = array<i32>} : memref<2x18x64xf32, #tpu.memory_space<vmem>>, vector<2x16x64xf32>,
    %c0_10 = arith.constant 0 : index
    %c0_11 = arith.constant 0 : index
    %c0_12 = arith.constant 0 : index
    %7 = vector.load %arg5[%c0_10, %c0_11, %c0_12] : memref<2x18x64xf32, #tpu.memory_space<vmem>>, vector<2x16x64xf32>
    %c0_13 = arith.constant 0 : index
    %c1_14 = arith.constant 1 : index
    %c0_15 = arith.constant 0 : index
    %8 = vector.load %arg5[%c0_13, %c1_14, %c0_15] : memref<2x18x64xf32, #tpu.memory_space<vmem>>, vector<2x16x64xf32>
    %c0_16 = arith.constant 0 : index
    %c2 = arith.constant 2 : index
    %c0_17 = arith.constant 0 : index
    %9 = vector.load %arg5[%c0_16, %c2, %c0_17] : memref<2x18x64xf32, #tpu.memory_space<vmem>>, vector<2x16x64xf32>
    %10 = tpu.concatenate %7, %8, %9 in 2 : vector<2x16x64xf32>, vector<2x16x64xf32>, vector<2x16x64xf32> -> vector<2x16x192xf32>
    %11 = vector.shape_cast %10 : vector<2x16x192xf32> to vector<32x192xf32>
    %12 = arith.truncf %11 : vector<32x192xf32> to vector<32x192xbf16>
    %c0_18 = arith.constant 0 : index
    %c0_19 = arith.constant 0 : index
    %13 = vector.load %arg2[%c0_18, %c0_19] : memref<192x128xbf16, #tpu.memory_space<vmem>>, vector<192x128xbf16>
    %cst_20 = arith.constant dense<0.000000e+00> : vector<32x128xf32>
    %14 = tpu.matmul %12, %13, %cst_20 {dimension_numbers = #tpu.dot_dimension_numbers<[1], [0], [0], [1], [0, 0, 1, 1], [], []>} : vector<32x192xbf16>, vector<192x128xbf16>, vector<32x128xf32> -> vector<32x128xf32>
    %cst_21 = arith.constant 0.000000e+00 : f32
    %15 = vector.broadcast %cst_21 : f32 to vector<32x128xf32>
    %16 = arith.cmpf ogt, %14, %15 : vector<32x128xf32>
    %cst_22 = arith.constant 0.00999999977 : f32
    %17 = vector.broadcast %cst_22 : f32 to vector<32x128xf32>
    %18 = arith.mulf %17, %14 : vector<32x128xf32>
    %19 = arith.select %16, %14, %18 : vector<32x128xi1>, vector<32x128xf32>
    %cst_23 = arith.constant 0.000000e+00 : f32
    %20 = vector.broadcast %cst_23 : f32 to vector<2x1x128xf32>
    %c0_24 = arith.constant 0 : index
    %c0_25 = arith.constant 0 : index
    %c0_26 = arith.constant 0 : index
    %21 = vector.load %arg6[%c0_24, %c0_25, %c0_26] : memref<2x18x128xf32, #tpu.memory_space<vmem>>, vector<2x1x128xf32>
    tpu.vector_store %arg6[%c0_24, %c0_25, %c0_26], %20 {strides = array<i32>} : memref<2x18x128xf32, #tpu.memory_space<vmem>>, vector<2x1x128xf32>,
    %cst_27 = arith.constant 0.000000e+00 : f32
    %22 = vector.broadcast %cst_27 : f32 to vector<2x1x128xf32>
    %c0_28 = arith.constant 0 : index
    %c17_29 = arith.constant 17 : index
    %c0_30 = arith.constant 0 : index
    %23 = vector.load %arg6[%c0_28, %c17_29, %c0_30] : memref<2x18x128xf32, #tpu.memory_space<vmem>>, vector<2x1x128xf32>
    tpu.vector_store %arg6[%c0_28, %c17_29, %c0_30], %22 {strides = array<i32>} : memref<2x18x128xf32, #tpu.memory_space<vmem>>, vector<2x1x128xf32>,
    %24 = vector.shape_cast %19 : vector<32x128xf32> to vector<2x16x128xf32>
    %c0_31 = arith.constant 0 : index
    %c1_32 = arith.constant 1 : index
    %c0_33 = arith.constant 0 : index
    %25 = vector.load %arg6[%c0_31, %c1_32, %c0_33] : memref<2x18x128xf32, #tpu.memory_space<vmem>>, vector<2x16x128xf32>
    tpu.vector_store %arg6[%c0_31, %c1_32, %c0_33], %24 {strides = array<i32>} : memref<2x18x128xf32, #tpu.memory_space<vmem>>, vector<2x16x128xf32>,
    %c0_34 = arith.constant 0 : index
    %c0_35 = arith.constant 0 : index
    %c0_36 = arith.constant 0 : index
    %26 = vector.load %arg6[%c0_34, %c0_35, %c0_36] : memref<2x18x128xf32, #tpu.memory_space<vmem>>, vector<2x16x128xf32>
    %c0_37 = arith.constant 0 : index
    %c1_38 = arith.constant 1 : index
    %c0_39 = arith.constant 0 : index
    %27 = vector.load %arg6[%c0_37, %c1_38, %c0_39] : memref<2x18x128xf32, #tpu.memory_space<vmem>>, vector<2x16x128xf32>
    %c0_40 = arith.constant 0 : index
    %c2_41 = arith.constant 2 : index
    %c0_42 = arith.constant 0 : index
    %28 = vector.load %arg6[%c0_40, %c2_41, %c0_42] : memref<2x18x128xf32, #tpu.memory_space<vmem>>, vector<2x16x128xf32>
    %29 = tpu.concatenate %26, %27, %28 in 2 : vector<2x16x128xf32>, vector<2x16x128xf32>, vector<2x16x128xf32> -> vector<2x16x384xf32>
    %30 = vector.shape_cast %29 : vector<2x16x384xf32> to vector<32x384xf32>
    %31 = arith.truncf %30 : vector<32x384xf32> to vector<32x384xbf16>
    %c0_43 = arith.constant 0 : index
    %c0_44 = arith.constant 0 : index
    %32 = vector.load %arg3[%c0_43, %c0_44] : memref<384x128xbf16, #tpu.memory_space<vmem>>, vector<384x128xbf16>
    %cst_45 = arith.constant dense<0.000000e+00> : vector<32x128xf32>
    %33 = tpu.matmul %31, %32, %cst_45 {dimension_numbers = #tpu.dot_dimension_numbers<[1], [0], [0], [1], [0, 0, 1, 1], [], []>} : vector<32x384xbf16>, vector<384x128xbf16>, vector<32x128xf32> -> vector<32x128xf32>
    %cst_46 = arith.constant 0.000000e+00 : f32
    %34 = vector.broadcast %cst_46 : f32 to vector<32x128xf32>
    %35 = arith.cmpf ogt, %33, %34 : vector<32x128xf32>
    %cst_47 = arith.constant 0.00999999977 : f32
    %36 = vector.broadcast %cst_47 : f32 to vector<32x128xf32>
    %37 = arith.mulf %36, %33 : vector<32x128xf32>
    %38 = arith.select %35, %33, %37 : vector<32x128xi1>, vector<32x128xf32>
    %39 = vector.shape_cast %38 : vector<32x128xf32> to vector<2x16x128xf32>
    %c0_48 = arith.constant 0 : index
    %c0_49 = arith.constant 0 : index
    %c0_50 = arith.constant 0 : index
    %40 = vector.load %arg4[%c0_48, %c0_49, %c0_50] : memref<2x16x128xf32, #tpu.memory_space<vmem>>, vector<2x16x128xf32>
    tpu.vector_store %arg4[%c0_48, %c0_49, %c0_50], %39 {strides = array<i32>} : memref<2x16x128xf32, #tpu.memory_space<vmem>>, vector<2x16x128xf32>,
    return
  }
  func.func @transform_0(%arg0: i32) -> (i32, i32, i32) {
    %c0_i32 = arith.constant 0 : i32
    %c0_i32_0 = arith.constant 0 : i32
    %c0_i32_1 = arith.constant 0 : i32
    return %arg0, %c0_i32, %c0_i32_0 : i32, i32, i32
  }
  func.func @transform_1(%arg0: i32) -> (i32, i32) {
    %c0_i32 = arith.constant 0 : i32
    %c0_i32_0 = arith.constant 0 : i32
    %c0_i32_1 = arith.constant 0 : i32
    return %c0_i32, %c0_i32_0 : i32, i32
  }
  func.func @transform_2(%arg0: i32) -> (i32, i32) {
    %c0_i32 = arith.constant 0 : i32
    %c0_i32_0 = arith.constant 0 : i32
    %c0_i32_1 = arith.constant 0 : i32
    return %c0_i32, %c0_i32_0 : i32, i32
  }
  func.func @transform_3(%arg0: i32) -> (i32, i32, i32) {
    %c0_i32 = arith.constant 0 : i32
    %c0_i32_0 = arith.constant 0 : i32
    %c0_i32_1 = arith.constant 0 : i32
    return %arg0, %c0_i32, %c0_i32_0 : i32, i32, i32
  }
}

</mosaic_0001>

<llo_original>
// kernel: conv_block_forward.1
$region0: #{conv_block_forward.1}
  #allocation0 [shape = 'u32[]', space=smem, size = 0x4, offset = 0x4, fixed_abs, tag = 'smem constant byte address 0x4 - core index']
  #allocation1 [shape = 'u32[72,128]{1,0:T(1,128)}', space=vmem, size = 0x9000, scoped, tag = 'internal scratch']
  #allocation2 [shape = 'f32[2,18,64]{2,1,0:T(8,128)}', space=vmem, size = 0x6000, scoped, tag = 'scratch operand']
  #allocation3 [shape = 'f32[2,18,128]{2,1,0:T(8,128)}', space=vmem, size = 0x6000, scoped, tag = 'scratch operand']
  %s0 = inlined_call_operand.vmem [shape: bf16[2,16,64], index: 0, kind: input, shape index: {}]
  %s1 = inlined_call_operand.vmem [shape: bf16[192,128], index: 1, kind: input, shape index: {}]
  %s2 = inlined_call_operand.vmem [shape: bf16[384,128], index: 2, kind: input, shape index: {}]
  %s3 = inlined_call_operand.vmem [shape: f32[2,16,128], index: 3, kind: output, shape index: {}]
  %s4 = sld [smem:[#allocation0]]
  $region22: #{conv_block_forward.1} parent=0
    _
  %s6 = ssub.s32 1, %s4
  %s7 = scalar_select 0, %s6, %s4
  // Predicated region
  $region2: #{conv_block_forward.1} parent=0 // pred_check
    _
  $region3: #{conv_block_forward.1} parent=0 // pred_check_branch
    %9 = sbr.rel (0) target = $region5
  $region4: #{conv_block_forward.1} parent=0 // pred_region
    _
  $region5: #{conv_block_forward.1} parent=0 // pred_fallthru
    _
  // Predicated region
  $region6: #{conv_block_forward.1} parent=0 // pred_check
    _
  $region7: #{conv_block_forward.1} parent=0 // pred_check_branch
    %11 = sbr.rel (0) target = $region9
  $region8: #{conv_block_forward.1} parent=0 // pred_region
    _
  $region9: #{conv_block_forward.1} parent=0 // pred_fallthru
    _
  // Predicated region
  $region10: #{conv_block_forward.1} parent=0 // pred_check
    _
  $region11: #{conv_block_forward.1} parent=0 // pred_check_branch
    %13 = sbr.rel (0) target = $region13
  $region12: #{conv_block_forward.1} parent=0 // pred_region
    _
  $region13: #{conv_block_forward.1} parent=0 // pred_fallthru
    _
  %vm15 = vcmask 516096
  %16 = vst.msk [vmem:[#allocation2] sm:$0x1] %vm15, 0.0
  %17 = vst.msk [vmem:[#allocation2 + $0x18] sm:$0x1] %vm15, 0.0
  %18 = vst.msk [vmem:[#allocation2 + $0x11] sm:$0x1] %vm15, 0.0
  %19 = vst.msk [vmem:[#allocation2 + $0x29] sm:$0x1] %vm15, 0.0
  %v20 = vld [vmem:[%s0] sm:$0xf]
  %v21 = vld [vmem:[%s0 + $0x4] sm:$0xf]
  %v22 = vld [vmem:[%s0 + $0x8] sm:$0xf]
  %v23 = vld [vmem:[%s0 + $0xc] sm:$0xf]
  %v24 = vunpack.c.l.bf16 %v20
  %v25 = vunpack.c.l.bf16 %v21
  %v26 = vunpack.c.l.bf16 %v22
  %v27 = vunpack.c.l.bf16 %v23
  %vm28 = vcmask 523264
  %29 = vst.msk [vmem:[#allocation2 + $0x1] sm:$0xff] %vm28, %v24
  %30 = vst.msk [vmem:[#allocation2 + $0x9] sm:$0xff] %vm28, %v25
  %31 = vst.msk [vmem:[#allocation2 + $0x19] sm:$0xff] %vm28, %v26
  %32 = vst.msk [vmem:[#allocation2 + $0x21] sm:$0xff] %vm28, %v27
  %v33 = vld [vmem:[#allocation2] sm:$0xff]
  %v34 = vld [vmem:[#allocation2 + $0x8] sm:$0xff]
  %v35 = vld [vmem:[#allocation2 + $0x18] sm:$0xff]
  %v36 = vld [vmem:[#allocation2 + $0x20] sm:$0xff]
  %v37 = vld [vmem:[#allocation2 + $0x1] sm:$0xff]
  %v38 = vld [vmem:[#allocation2 + $0x9] sm:$0xff]
  %v39 = vld [vmem:[#allocation2 + $0x19] sm:$0xff]
  %v40 = vld [vmem:[#allocation2 + $0x21] sm:$0xff]
  %v41 = vld [vmem:[#allocation2 + $0x2] sm:$0xff]
  %v42 = vld [vmem:[#allocation2 + $0xa] sm:$0xff]
  %v43 = vld [vmem:[#allocation2 + $0x1a] sm:$0xff]
  %v44 = vld [vmem:[#allocation2 + $0x22] sm:$0xff]
  %49 = vrot.lane.b32.xlu0 %v37, 64
  %v50 = vpop.permute.xlu0 %49
  %51 = vrot.lane.b32.xlu0 %v38, 64
  %v52 = vpop.permute.xlu0 %51
  %53 = vrot.lane.b32.xlu0 %v39, 64
  %v54 = vpop.permute.xlu0 %53
  %55 = vrot.lane.b32.xlu0 %v40, 64
  %v56 = vpop.permute.xlu0 %55
  %v61 = vsel %vm28, %v33, %v50
  %v62 = vsel %vm28, %v34, %v52
  %v63 = vsel %vm28, %v35, %v54
  %v64 = vsel %vm28, %v36, %v56
  %v65 = vpack.c.bf16 %v62, %v61
  %v66 = vpack.c.bf16 %v42, %v41
  %v67 = vpack.c.bf16 %v64, %v63
  %v68 = vpack.c.bf16 %v44, %v43
  %v69 = vld [vmem:[%s1] sm:$0xf]
  %v70 = vld [vmem:[%s1 + $0x4] sm:$0xf]
  %v71 = vld [vmem:[%s1 + $0x8] sm:$0xf]
  %v72 = vld [vmem:[%s1 + $0xc] sm:$0xf]
  %v73 = vld [vmem:[%s1 + $0x10] sm:$0xf]
  %v74 = vld [vmem:[%s1 + $0x14] sm:$0xf]
  %v75 = vld [vmem:[%s1 + $0x18] sm:$0xf]
  %v76 = vld [vmem:[%s1 + $0x1c] sm:$0xf]
  %v77 = vld [vmem:[%s1 + $0x20] sm:$0xf]
  %v78 = vld [vmem:[%s1 + $0x24] sm:$0xf]
  %v79 = vld [vmem:[%s1 + $0x28] sm:$0xf]
  %v80 = vld [vmem:[%s1 + $0x2c] sm:$0xf]
  %v81 = vld [vmem:[%s1 + $0x30] sm:$0xf]
  %v82 = vld [vmem:[%s1 + $0x34] sm:$0xf]
  %v83 = vld [vmem:[%s1 + $0x38] sm:$0xf]
  %v84 = vld [vmem:[%s1 + $0x3c] sm:$0xf]
  %v85 = vld [vmem:[%s1 + $0x40] sm:$0xf]
  %v86 = vld [vmem:[%s1 + $0x44] sm:$0xf]
  %v87 = vld [vmem:[%s1 + $0x48] sm:$0xf]
  %v88 = vld [vmem:[%s1 + $0x4c] sm:$0xf]
  %v89 = vld [vmem:[%s1 + $0x50] sm:$0xf]
  %v90 = vld [vmem:[%s1 + $0x54] sm:$0xf]
  %v91 = vld [vmem:[%s1 + $0x58] sm:$0xf]
  %v92 = vld [vmem:[%s1 + $0x5c] sm:$0xf]
  %v117 = vunpack.c.l.b16 %v69
  %v118 = vunpack.c.l.b16 %v70
  %v119 = vunpack.c.l.b16 %v71
  %v120 = vunpack.c.l.b16 %v72
  %v121 = vunpack.c.l.b16 %v73
  %v122 = vunpack.c.l.b16 %v74
  %v123 = vunpack.c.l.b16 %v75
  %v124 = vunpack.c.l.b16 %v76
  %v125 = vunpack.c.l.b16 %v77
  %v126 = vunpack.c.l.b16 %v78
  %v127 = vunpack.c.l.b16 %v79
  %v128 = vunpack.c.l.b16 %v80
  %v129 = vunpack.c.l.b16 %v81
  %v130 = vunpack.c.l.b16 %v82
  %v131 = vunpack.c.l.b16 %v83
  %v132 = vunpack.c.l.b16 %v84
  %v133 = vunpack.c.l.b16 %v85
  %v134 = vunpack.c.l.b16 %v86
  %v135 = vunpack.c.l.b16 %v87
  %v136 = vunpack.c.l.b16 %v88
  %v137 = vunpack.c.l.b16 %v89
  %v138 = vunpack.c.l.b16 %v90
  %v139 = vunpack.c.l.b16 %v91
  %v140 = vunpack.c.l.b16 %v92
  %v141 = vpack.c.b16 %v118, %v117
  %v142 = vpack.c.b16 %v120, %v119
  %v143 = vpack.c.b16 %v122, %v121
  %v144 = vpack.c.b16 %v124, %v123
  %v145 = vpack.c.b16 %v126, %v125
  %v146 = vpack.c.b16 %v128, %v127
  %v147 = vpack.c.b16 %v130, %v129
  %v148 = vpack.c.b16 %v132, %v131
  %v149 = vpack.c.b16 %v134, %v133
  %v150 = vpack.c.b16 %v136, %v135
  %v151 = vpack.c.b16 %v138, %v137
  %v152 = vpack.c.b16 %v140, %v139
  %v166 = vsel %vm28, %v66, 0
  %v169 = vsel %vm28, %v68, 0
  %171 = vmatpush.bf16.msra.mxu0 %v148
  %172 = vmatpush.bf16.msra.mxu0 %v147
  %173 = vmatpush.bf16.msra.mxu0 %v146
  %174 = vmatpush.bf16.msra.mxu0 %v145
  %175 = vmatpush.bf16.msra.mxu0 %v144
  %176 = vmatpush.bf16.msra.mxu0 %v143
  %177 = vmatpush.bf16.msra.mxu0 %v142
  %178 = vmatpush.bf16.msra.mxu0 %v141
  %179 = vmatmul.bf16.gmra.mxu0 %v65
  %v180 = vpop.f32.mrf.mxu0
  %v181 = vadd.f32 0.0, %v180
  %v182 = vpop.f32.mrf.mxu0
  %v183 = vadd.f32 0.0, %v182
  %184 = vmatmul.bf16.gmra.mxu0 %v67
  %v185 = vpop.f32.mrf.mxu0
  %v186 = vadd.f32 0.0, %v185
  %v187 = vpop.f32.mrf.mxu0
  %v188 = vadd.f32 0.0, %v187
  %189 = vdwg.mxu0
  %190 = vmatpush.bf16.msra.mxu0 0
  %191 = vmatpush.bf16.msra.mxu0 0
  %192 = vmatpush.bf16.msra.mxu0 0
  %193 = vmatpush.bf16.msra.mxu0 0
  %194 = vmatpush.bf16.msra.mxu0 %v152
  %195 = vmatpush.bf16.msra.mxu0 %v151
  %196 = vmatpush.bf16.msra.mxu0 %v150
  %197 = vmatpush.bf16.msra.mxu0 %v149
  %198 = vmatmul.bf16.gmra.mxu0 %v166
  %v199 = vpop.f32.mrf.mxu0
  %v200 = vadd.f32 %v181, %v199
  %v201 = vpop.f32.mrf.mxu0
  %v202 = vadd.f32 %v183, %v201
  %203 = vmatmul.bf16.gmra.mxu0 %v169
  %v204 = vpop.f32.mrf.mxu0
  %v205 = vadd.f32 %v186, %v204
  %v206 = vpop.f32.mrf.mxu0
  %v207 = vadd.f32 %v188, %v206
  %208 = vdwg.mxu0
  %vm209 = vcmp.gt.f32.partialorder %v200, 0.0
  %vm210 = vcmp.gt.f32.partialorder %v202, 0.0
  %vm211 = vcmp.gt.f32.partialorder %v205, 0.0
  %vm212 = vcmp.gt.f32.partialorder %v207, 0.0
  %v213 = vmul.f32 %v200, 0.01
  %v214 = vmul.f32 %v202, 0.01
  %v215 = vmul.f32 %v205, 0.01
  %v216 = vmul.f32 %v207, 0.01
  %v217 = vsel %vm209, %v200, %v213
  %v218 = vsel %vm210, %v202, %v214
  %v219 = vsel %vm211, %v205, %v215
  %v220 = vsel %vm212, %v207, %v216
  %221 = vst [vmem:[#allocation3] sm:$0x1] 0.0
  %222 = vst [vmem:[#allocation3 + $0x18] sm:$0x1] 0.0
  %223 = vst [vmem:[#allocation3 + $0x11] sm:$0x1] 0.0
  %224 = vst [vmem:[#allocation3 + $0x29] sm:$0x1] 0.0
  %225 = vst [vmem:[#allocation3 + $0x1] sm:$0xff] %v217
  %226 = vst [vmem:[#allocation3 + $0x9] sm:$0xff] %v218
  %227 = vst [vmem:[#allocation3 + $0x19] sm:$0xff] %v219
  %228 = vst [vmem:[#allocation3 + $0x21] sm:$0xff] %v220
  %v229 = vld [vmem:[#allocation3] sm:$0xff]
  %v230 = vld [vmem:[#allocation3 + $0x8] sm:$0xff]
  %v231 = vld [vmem:[#allocation3 + $0x18] sm:$0xff]
  %v232 = vld [vmem:[#allocation3 + $0x20] sm:$0xff]
  %v233 = vld [vmem:[#allocation3 + $0x1] sm:$0xff]
  %v234 = vld [vmem:[#allocation3 + $0x9] sm:$0xff]
  %v235 = vld [vmem:[#allocation3 + $0x19] sm:$0xff]
  %v236 = vld [vmem:[#allocation3 + $0x21] sm:$0xff]
  %v237 = vld [vmem:[#allocation3 + $0x2] sm:$0xff]
  %v238 = vld [vmem:[#allocation3 + $0xa] sm:$0xff]
  %v239 = vld [vmem:[#allocation3 + $0x1a] sm:$0xff]
  %v240 = vld [vmem:[#allocation3 + $0x22] sm:$0xff]
  %v241 = vpack.c.bf16 %v230, %v229
  %v242 = vpack.c.bf16 %v234, %v233
  %v243 = vpack.c.bf16 %v238, %v237
  %v244 = vpack.c.bf16 %v232, %v231
  %v245 = vpack.c.bf16 %v236, %v235
  %v246 = vpack.c.bf16 %v240, %v239
  %v247 = vld [vmem:[%s2] sm:$0xf]
  %v248 = vld [vmem:[%s2 + $0x4] sm:$0xf]
  %v249 = vld [vmem:[%s2 + $0x8] sm:$0xf]
  %v250 = vld [vmem:[%s2 + $0xc] sm:$0xf]
  %v251 = vld [vmem:[%s2 + $0x10] sm:$0xf]
  %v252 = vld [vmem:[%s2 + $0x14] sm:$0xf]
  %v253 = vld [vmem:[%s2 + $0x18] sm:$0xf]
  %v254 = vld [vmem:[%s2 + $0x1c] sm:$0xf]
  %v255 = vld [vmem:[%s2 + $0x20] sm:$0xf]
  %v256 = vld [vmem:[%s2 + $0x24] sm:$0xf]
  %v257 = vld [vmem:[%s2 + $0x28] sm:$0xf]
  %v258 = vld [vmem:[%s2 + $0x2c] sm:$0xf]
  %v259 = vld [vmem:[%s2 + $0x30] sm:$0xf]
  %v260 = vld [vmem:[%s2 + $0x34] sm:$0xf]
  %v261 = vld [vmem:[%s2 + $0x38] sm:$0xf]
  %v262 = vld [vmem:[%s2 + $0x3c] sm:$0xf]
  %v263 = vld [vmem:[%s2 + $0x40] sm:$0xf]
  %v264 = vld [vmem:[%s2 + $0x44] sm:$0xf]
  %v265 = vld [vmem:[%s2 + $0x48] sm:$0xf]
  %v266 = vld [vmem:[%s2 + $0x4c] sm:$0xf]
  %v267 = vld [vmem:[%s2 + $0x50] sm:$0xf]
  %v268 = vld [vmem:[%s2 + $0x54] sm:$0xf]
  %v269 = vld [vmem:[%s2 + $0x58] sm:$0xf]
  %v270 = vld [vmem:[%s2 + $0x5c] sm:$0xf]
  %v271 = vld [vmem:[%s2 + $0x60] sm:$0xf]
  %v272 = vld [vmem:[%s2 + $0x64] sm:$0xf]
  %v273 = vld [vmem:[%s2 + $0x68] sm:$0xf]
  %v274 = vld [vmem:[%s2 + $0x6c] sm:$0xf]
  %v275 = vld [vmem:[%s2 + $0x70] sm:$0xf]
  %v276 = vld [vmem:[%s2 + $0x74] sm:$0xf]
  %v277 = vld [vmem:[%s2 + $0x78] sm:$0xf]
  %v278 = vld [vmem:[%s2 + $0x7c] sm:$0xf]
  %v279 = vld [vmem:[%s2 + $0x80] sm:$0xf]
  %v280 = vld [vmem:[%s2 + $0x84] sm:$0xf]
  %v281 = vld [vmem:[%s2 + $0x88] sm:$0xf]
  %v282 = vld [vmem:[%s2 + $0x8c] sm:$0xf]
  %v283 = vld [vmem:[%s2 + $0x90] sm:$0xf]
  %v284 = vld [vmem:[%s2 + $0x94] sm:$0xf]
  %v285 = vld [vmem:[%s2 + $0x98] sm:$0xf]
  %v286 = vld [vmem:[%s2 + $0x9c] sm:$0xf]
  %v287 = vld [vmem:[%s2 + $0xa0] sm:$0xf]
  %v288 = vld [vmem:[%s2 + $0xa4] sm:$0xf]
  %v289 = vld [vmem:[%s2 + $0xa8] sm:$0xf]
  %v290 = vld [vmem:[%s2 + $0xac] sm:$0xf]
  %v291 = vld [vmem:[%s2 + $0xb0] sm:$0xf]
  %v292 = vld [vmem:[%s2 + $0xb4] sm:$0xf]
  %v293 = vld [vmem:[%s2 + $0xb8] sm:$0xf]
  %v294 = vld [vmem:[%s2 + $0xbc] sm:$0xf]
  %v343 = vunpack.c.l.b16 %v247
  %v344 = vunpack.c.l.b16 %v248
  %v345 = vunpack.c.l.b16 %v249
  %v346 = vunpack.c.l.b16 %v250
  %v347 = vunpack.c.l.b16 %v251
  %v348 = vunpack.c.l.b16 %v252
  %v349 = vunpack.c.l.b16 %v253
  %v350 = vunpack.c.l.b16 %v254
  %v351 = vunpack.c.l.b16 %v255
  %v352 = vunpack.c.l.b16 %v256
  %v353 = vunpack.c.l.b16 %v257
  %v354 = vunpack.c.l.b16 %v258
  %v355 = vunpack.c.l.b16 %v259
  %v356 = vunpack.c.l.b16 %v260
  %v357 = vunpack.c.l.b16 %v261
  %v358 = vunpack.c.l.b16 %v262
  %v359 = vunpack.c.l.b16 %v263
  %v360 = vunpack.c.l.b16 %v264
  %v361 = vunpack.c.l.b16 %v265
  %v362 = vunpack.c.l.b16 %v266
  %v363 = vunpack.c.l.b16 %v267
  %v364 = vunpack.c.l.b16 %v268
  %v365 = vunpack.c.l.b16 %v269
  %v366 = vunpack.c.l.b16 %v270
  %v367 = vunpack.c.l.b16 %v271
  %v368 = vunpack.c.l.b16 %v272
  %v369 = vunpack.c.l.b16 %v273
  %v370 = vunpack.c.l.b16 %v274
  %v371 = vunpack.c.l.b16 %v275
  %v372 = vunpack.c.l.b16 %v276
  %v373 = vunpack.c.l.b16 %v277
  %v374 = vunpack.c.l.b16 %v278
  %v375 = vunpack.c.l.b16 %v279
  %v376 = vunpack.c.l.b16 %v280
  %v377 = vunpack.c.l.b16 %v281
  %v378 = vunpack.c.l.b16 %v282
  %v379 = vunpack.c.l.b16 %v283
  %v380 = vunpack.c.l.b16 %v284
  %v381 = vunpack.c.l.b16 %v285
  %v382 = vunpack.c.l.b16 %v286
  %v383 = vunpack.c.l.b16 %v287
  %v384 = vunpack.c.l.b16 %v288
  %v385 = vunpack.c.l.b16 %v289
  %v386 = vunpack.c.l.b16 %v290
  %v387 = vunpack.c.l.b16 %v291
  %v388 = vunpack.c.l.b16 %v292
  %v389 = vunpack.c.l.b16 %v293
  %v390 = vunpack.c.l.b16 %v294
  %v391 = vpack.c.b16 %v344, %v343
  %v392 = vpack.c.b16 %v346, %v345
  %v393 = vpack.c.b16 %v348, %v347
  %v394 = vpack.c.b16 %v350, %v349
  %v395 = vpack.c.b16 %v352, %v351
  %v396 = vpack.c.b16 %v354, %v353
  %v397 = vpack.c.b16 %v356, %v355
  %v398 = vpack.c.b16 %v358, %v357
  %v399 = vpack.c.b16 %v360, %v359
  %v400 = vpack.c.b16 %v362, %v361
  %v401 = vpack.c.b16 %v364, %v363
  %v402 = vpack.c.b16 %v366, %v365
  %v403 = vpack.c.b16 %v368, %v367
  %v404 = vpack.c.b16 %v370, %v369
  %v405 = vpack.c.b16 %v372, %v371
  %v406 = vpack.c.b16 %v374, %v373
  %v407 = vpack.c.b16 %v376, %v375
  %v408 = vpack.c.b16 %v378, %v377
  %v409 = vpack.c.b16 %v380, %v379
  %v410 = vpack.c.b16 %v382, %v381
  %v411 = vpack.c.b16 %v384, %v383
  %v412 = vpack.c.b16 %v386, %v385
  %v413 = vpack.c.b16 %v388, %v387
  %v414 = vpack.c.b16 %v390, %v389
  %439 = vmatpush.bf16.msra.mxu0 %v398
  %440 = vmatpush.bf16.msra.mxu0 %v397
  %441 = vmatpush.bf16.msra.mxu0 %v396
  %442 = vmatpush.bf16.msra.mxu0 %v395
  %443 = vmatpush.bf16.msra.mxu0 %v394
  %444 = vmatpush.bf16.msra.mxu0 %v393
  %445 = vmatpush.bf16.msra.mxu0 %v392
  %446 = vmatpush.bf16.msra.mxu0 %v391
  %447 = vmatmul.bf16.gmra.mxu0 %v241
  %v448 = vpop.f32.mrf.mxu0
  %v449 = vadd.f32 0.0, %v448
  %v450 = vpop.f32.mrf.mxu0
  %v451 = vadd.f32 0.0, %v450
  %452 = vmatmul.bf16.gmra.mxu0 %v244
  %v453 = vpop.f32.mrf.mxu0
  %v454 = vadd.f32 0.0, %v453
  %v455 = vpop.f32.mrf.mxu0
  %v456 = vadd.f32 0.0, %v455
  %457 = vdwg.mxu0
  %458 = vmatpush.bf16.msra.mxu0 %v406
  %459 = vmatpush.bf16.msra.mxu0 %v405
  %460 = vmatpush.bf16.msra.mxu0 %v404
  %461 = vmatpush.bf16.msra.mxu0 %v403
  %462 = vmatpush.bf16.msra.mxu0 %v402
  %463 = vmatpush.bf16.msra.mxu0 %v401
  %464 = vmatpush.bf16.msra.mxu0 %v400
  %465 = vmatpush.bf16.msra.mxu0 %v399
  %466 = vmatmul.bf16.gmra.mxu0 %v242
  %v467 = vpop.f32.mrf.mxu0
  %v468 = vadd.f32 %v449, %v467
  %v469 = vpop.f32.mrf.mxu0
  %v470 = vadd.f32 %v451, %v469
  %471 = vmatmul.bf16.gmra.mxu0 %v245
  %v472 = vpop.f32.mrf.mxu0
  %v473 = vadd.f32 %v454, %v472
  %v474 = vpop.f32.mrf.mxu0
  %v475 = vadd.f32 %v456, %v474
  %476 = vdwg.mxu0
  %477 = vmatpush.bf16.msra.mxu0 %v414
  %478 = vmatpush.bf16.msra.mxu0 %v413
  %479 = vmatpush.bf16.msra.mxu0 %v412
  %480 = vmatpush.bf16.msra.mxu0 %v411
  %481 = vmatpush.bf16.msra.mxu0 %v410
  %482 = vmatpush.bf16.msra.mxu0 %v409
  %483 = vmatpush.bf16.msra.mxu0 %v408
  %484 = vmatpush.bf16.msra.mxu0 %v407
  %485 = vmatmul.bf16.gmra.mxu0 %v243
  %v486 = vpop.f32.mrf.mxu0
  %v487 = vadd.f32 %v468, %v486
  %v488 = vpop.f32.mrf.mxu0
  %v489 = vadd.f32 %v470, %v488
  %490 = vmatmul.bf16.gmra.mxu0 %v246
  %v491 = vpop.f32.mrf.mxu0
  %v492 = vadd.f32 %v473, %v491
  %v493 = vpop.f32.mrf.mxu0
  %v494 = vadd.f32 %v475, %v493
  %495 = vdwg.mxu0
  %vm496 = vcmp.gt.f32.partialorder %v487, 0.0
  %vm497 = vcmp.gt.f32.partialorder %v489, 0.0
  %vm498 = vcmp.gt.f32.partialorder %v492, 0.0
  %vm499 = vcmp.gt.f32.partialorder %v494, 0.0
  %v500 = vmul.f32 %v487, 0.01
  %v501 = vmul.f32 %v489, 0.01
  %v502 = vmul.f32 %v492, 0.01
  %v503 = vmul.f32 %v494, 0.01
  %v504 = vsel %vm496, %v487, %v500
  %v505 = vsel %vm497, %v489, %v501
  %v506 = vsel %vm498, %v492, %v502
  %v507 = vsel %vm499, %v494, %v503
  %508 = vst [vmem:[%s3] sm:$0xff] %v504
  %509 = vst [vmem:[%s3 + $0x8] sm:$0xff] %v505
  %510 = vst [vmem:[%s3 + $0x10] sm:$0xff] %v506
  %511 = vst [vmem:[%s3 + $0x18] sm:$0xff] %v507
  // Predicated region
  $region14: #{conv_block_forward.1} parent=0 // pred_check
    _
  $region15: #{conv_block_forward.1} parent=0 // pred_check_branch
    %513 = sbr.rel (0) target = $region17
  $region16: #{conv_block_forward.1} parent=0 // pred_region
    _
  $region17: #{conv_block_forward.1} parent=0 // pred_fallthru
    _
  // Predicated region
  $region18: #{conv_block_forward.1} parent=0 // pred_check
    _
  $region19: #{conv_block_forward.1} parent=0 // pred_check_branch
    %515 = sbr.rel (0) target = $region21
  $region20: #{conv_block_forward.1} parent=0 // pred_region
    _
  $region21: #{conv_block_forward.1} parent=0 // pred_fallthru
    _

</llo_original>
